<compile_context>
chip_gen: v6e
topology: v6e:2x2x1
jax: 0.10.0
libtpu: 0.0.40
codegen_flags: <defaults>
</compile_context>

<pallas_src>
import functools
import math

import numpy as np

import jax
import jax.numpy as jnp
from jax import lax
from jax.experimental import pallas as pl
from jax.experimental.pallas import tpu as pltpu

# Finite stand-in for "+inf R" in the pre-scaled (a = -R/gamma) domain.
# exp(-1e30 - finite) flushes to exactly 0, so it behaves like -inf without
# ever producing inf/NaN inside the soft-min.  (Guard: this assumes
# |C|/gamma << 3e38 for masked lanes, which holds for any sane input/gamma.)
_NEG = -1e30


def _round_up(x, r):
    return -(-x // r) * r


def _vmem_limit(est_bytes):
    """Generation-aware VMEM limit: never request more than ~3/4 of physical."""
    cap = 64 * (1 << 20)          # conservative (v7x-sized) fallback
    try:
        cap = int(pltpu.get_tpu_info().vmem_capacity_bytes)
    except Exception:
        pass
    hard = (cap * 3) // 4
    return int(min(hard, max(32 * (1 << 20), int(est_bytes))))


# ----------------------------------------------------------------------------
# Pairwise squared-Euclidean cost kernel (scaled by 1/gamma in-kernel)
# ----------------------------------------------------------------------------
def _pairwise_kernel(a_ref, bt_ref, o_ref, *, scale):
    a = a_ref[...]
    bt = bt_ref[...]
    d = a.shape[1]
    if d < 32:
        # Tiny feature dim: VPU broadcast-subtract; the MXU would run at a few
        # percent utilization with K=d and pad d to 128 lanes.
        acc = jnp.zeros((a.shape[0], bt.shape[1]), jnp.float32)
        for c in range(d):
            diff = a[:, c:c + 1] - bt[c:c + 1, :]
            acc = acc + diff * diff
    else:
        sa = jnp.sum(a * a, axis=1, keepdims=True)       # (M, 1)
        sb = jnp.sum(bt * bt, axis=0, keepdims=True)     # (1, N)
        cross = lax.dot_general(a, bt, (((1,), (0,)), ((), ())),
                                preferred_element_type=jnp.float32,
                                precision=lax.Precision.HIGHEST)
        acc = sa + sb - 2.0 * cross
    o_ref[...] = jnp.float32(scale) * acc


def _pairwise_call(a, bt, scale):
    mm, d = a.shape
    nn = bt.shape[1]
    est = 12 * (mm * d + d * nn + mm * nn) + (8 << 20)
    return pl.pallas_call(
        functools.partial(_pairwise_kernel, scale=float(scale)),
        out_shape=jax.ShapeDtypeStruct((mm, nn), jnp.float32),
        in_specs=[pl.BlockSpec((mm, d), lambda: (0, 0)),
                  pl.BlockSpec((d, nn), lambda: (0, 0))],
        out_specs=pl.BlockSpec((mm, nn), lambda: (0, 0)),
        compiler_params=pltpu.CompilerParams(vmem_limit_bytes=_vmem_limit(est)),
    )(a, bt)


# ----------------------------------------------------------------------------
# Gather-free anti-diagonal skews (pad + reshape diagonal shear, pure JAX glue)
# ----------------------------------------------------------------------------
def _shear_rows(a, q):
    """S[t, r] = a[t, r + t] if r + t < a.shape[1] else 0; shape (T, q)."""
    t_dim, wa = a.shape
    w = max(wa, t_dim + q - 1)
    ap = jnp.pad(a, ((0, 0), (0, w - wa)))
    flat = jnp.concatenate([ap.reshape(-1), jnp.zeros((t_dim,), a.dtype)])
    return flat.reshape(t_dim, w + 1)[:, :q]


def _skew_antidiag(dmat, m, k_tot, h):
    """B[s, t] = dmat[t, k_tot - s - t] if 0 <= k_tot - s - t < m else 0.

    dmat: (T, m);  result: (h, T).  Pure pad/reshape/transpose — no gather.
    """
    dflip = dmat[:, ::-1].astype(jnp.float32)            # dflip[t, c] = dmat[t, m-1-c]
    a = jnp.pad(dflip, ((0, 0), (k_tot - m + 1, 0)))      # a[t, s+t] = dmat[t, k_tot-s-t]
    return _shear_rows(a, h).T


def _skew2(dmat, m, h2):
    """C[p, t] = dmat[t, p - t] (0 outside), padded to h2 rows; shape (h2, T)."""
    b = _skew_antidiag(dmat, m, 2 * m - 2, 2 * m - 1)
    c = b[::-1, :]
    return jnp.pad(c, ((0, h2 - (2 * m - 1)), (0, 0)))


# ----------------------------------------------------------------------------
# In-kernel wavefront shift (always XLU roll: padded dims are 8/128-aligned)
# ----------------------------------------------------------------------------
def _shift(x, axis, zero_mask):
    """y[..., t, ...] = x[..., t-1, ...] along `axis`; slot 0 filled with _NEG."""
    return jnp.where(zero_mask, _NEG, pltpu.roll(x, 1, axis))


# ----------------------------------------------------------------------------
# Soft-min DP kernels (wavefront over anti-diagonals, carries hold -R/gamma;
# all costs are pre-scaled by 1/gamma)
# ----------------------------------------------------------------------------
def _dp2_kernel(c2s_ref, out_ref, *, m, mlane, n_passes, n_chunks):
    lane = lax.broadcasted_iota(jnp.int32, (1, mlane), 1)    # lane t <-> i
    lane0 = lane == 0
    lane_valid = lane < m
    init = jnp.full((1, mlane), _NEG, jnp.float32)
    cap_c = (n_passes - 1) // 8
    cap_u = (n_passes - 1) % 8

    def chunk_body(c, carry):
        a1, a2, res = carry                                  # diagonals p-1, p-2
        base = pl.multiple_of(c * 8, 8)
        blk = c2s_ref[pl.ds(base, 8), :]                     # aligned (8, mlane) fetch
        for u in range(8):                                   # static unroll
            p = c * 8 + u
            crow = blk[u:u + 1, :]                           # costs on diag p (/gamma)
            r0 = a1                                          # R[i,   j-1]
            r1 = _shift(a1, 1, lane0)                        # R[i-1, j  ]
            r2 = _shift(a2, 1, lane0)                        # R[i-1, j-1]
            if u == 0:
                r2 = jnp.where(lane0 & (c == 0), jnp.float32(0.0), r2)  # R[0,0] seed
            rmax = jnp.maximum(jnp.maximum(r0, r1), r2)
            rsum = jnp.exp(r0 - rmax) + jnp.exp(r1 - rmax) + jnp.exp(r2 - rmax)
            a_new = jnp.log(rsum) + rmax - crow              # a = -(C + softmin)/gamma
            j = p - lane
            cur = jnp.where((j >= 0) & (j < m) & lane_valid, a_new, _NEG)
            if u == cap_u:
                res = jnp.where(c == cap_c, cur, res)        # capture diag 2m-2
            a2 = a1
            a1 = cur
        return a1, a2, res

    _, _, res = lax.fori_loop(0, n_chunks, chunk_body, (init, init, init))
    out_ref[...] = res


def _dp3_kernel(d12_ref, b13_ref, b23_ref, out_ref, *, m, msub, mlane, n_passes):
    row = lax.broadcasted_iota(jnp.int32, (msub, mlane), 0)   # i
    col = lax.broadcasted_iota(jnp.int32, (msub, mlane), 1)   # j
    rc = row + col
    row0 = row == 0
    col0 = col == 0
    origin = row0 & col0
    in_range_ij = (row < m) & (col < m)
    # 0/1 identity for the exact (precision=HIGHEST) MXU transpose of the
    # sublane-sliced d13 window.  (A dynamic-lane-slice of a pre-sheared d13
    # buffer would avoid the MXU entirely; kept as a follow-up.)
    eye = (lax.broadcasted_iota(jnp.int32, (msub, msub), 0)
           == lax.broadcasted_iota(jnp.int32, (msub, msub), 1)).astype(jnp.float32)
    k_tot = n_passes - 1                                      # 3m - 3
    init = jnp.full((msub, mlane), _NEG, jnp.float32)

    def body(p, carry):
        a1, a2, a3 = carry                                    # planes p-1, p-2, p-3
        start = k_tot - p
        s13 = b13_ref[pl.ds(start, mlane), :]                 # s13[j, i] = d13[i, p-i-j]/g
        c23 = b23_ref[pl.ds(start, msub), :]                  # c23[i, j] = d23[j, p-i-j]/g
        c13 = lax.dot_general(eye, s13, (((1,), (1,)), ((), ())),
                              preferred_element_type=jnp.float32,
                              precision=lax.Precision.HIGHEST)
        # d12 re-loaded from VMEM each plane (kept out of the live carry set).
        cplane = d12_ref[...] + c13 + c23                     # C3 plane / gamma

        # --- 7-term softmin, shared-max form (7 exps + 1 log, reduced live set)
        sj2 = _shift(a2, 1, col0)                             # R[i,   j-1, k-1]
        d5 = _shift(sj2, 0, row0)                             # R[i-1, j-1, k  ]
        d6 = _shift(_shift(a3, 1, col0), 0, row0)             # R[i-1, j-1, k-1]
        d6 = jnp.where(origin & (p == 0), jnp.float32(0.0), d6)   # R[0,0,0] = 0 seed
        m12 = jnp.maximum(a1, a2)
        rmax = jnp.maximum(
            jnp.maximum(a1, _shift(m12, 1, col0)),            # >= sj1, sj2
            jnp.maximum(_shift(m12, 0, row0),                 # >= si1, si2
                        jnp.maximum(d5, d6)))
        s = jnp.exp(a1 - rmax)                                # R[i, j, k-1]
        s = s + jnp.exp(_shift(a1, 1, col0) - rmax)           # R[i, j-1, k]
        s = s + jnp.exp(sj2 - rmax)
        s = s + jnp.exp(_shift(a1, 0, row0) - rmax)           # R[i-1, j, k]
        s = s + jnp.exp(_shift(a2, 0, row0) - rmax)           # R[i-1, j, k-1]
        s = s + jnp.exp(d5 - rmax)
        s = s + jnp.exp(d6 - rmax)
        a_new = jnp.log(s) + rmax - cplane
        k = p - rc
        cur = jnp.where((k >= 0) & (k < m) & in_range_ij, a_new, _NEG)
        return cur, a1, a2

    # unroll left at 1: at plane sizes >= (128,128) unrolling only raises vreg
    # pressure; the 8x chunk unroll lives in DP2 where planes are (1, m).
    a_last, _, _ = lax.fori_loop(0, n_passes, body, (init, init, init))
    out_ref[...] = a_last


def _dp2_call(c2s, m, mlane, n_passes, n_chunks):
    h2 = c2s.shape[0]
    est = 4 * (h2 * mlane + mlane) + (16 << 20)
    return pl.pallas_call(
        functools.partial(_dp2_kernel, m=m, mlane=mlane,
                          n_passes=n_passes, n_chunks=n_chunks),
        out_shape=jax.ShapeDtypeStruct((1, mlane), jnp.float32),
        in_specs=[pl.BlockSpec((h2, mlane), lambda: (0, 0))],
        out_specs=pl.BlockSpec((1, mlane), lambda: (0, 0)),
        compiler_params=pltpu.CompilerParams(vmem_limit_bytes=_vmem_limit(est)),
    )(c2s)


def _dp3_call(d12, b13, b23, m, msub, mlane):
    h13 = b13.shape[0]
    h23 = b23.shape[0]
    n_passes = 3 * m - 2
    est = (4 * (2 * msub * mlane + h13 * msub + h23 * mlane)
           + 64 * msub * mlane + (16 << 20))          # + generous spill headroom
    return pl.pallas_call(
        functools.partial(_dp3_kernel, m=m, msub=msub, mlane=mlane,
                          n_passes=n_passes),
        out_shape=jax.ShapeDtypeStruct((msub, mlane), jnp.float32),
        in_specs=[pl.BlockSpec((msub, mlane), lambda: (0, 0)),
                  pl.BlockSpec((h13, msub), lambda: (0, 0)),
                  pl.BlockSpec((h23, mlane), lambda: (0, 0))],
        out_specs=pl.BlockSpec((msub, mlane), lambda: (0, 0)),
        compiler_params=pltpu.CompilerParams(vmem_limit_bytes=_vmem_limit(est)),
    )(d12, b13, b23)


# ----------------------------------------------------------------------------
# Module-equivalent wrappers
# ----------------------------------------------------------------------------
@functools.partial(jax.jit, static_argnames=("gamma",))
def gmdtw2(x1, x2, gamma=1.0):
    x1 = jnp.asarray(x1, jnp.float32)
    x2 = jnp.asarray(x2, jnp.float32)
    m, _ = x1.shape
    mlane = _round_up(m, 128)
    inv_g = 1.0 / float(gamma)
    x1p = jnp.pad(x1, ((0, mlane - m), (0, 0)))
    dmat = _pairwise_call(x1p, x2.T, inv_g)             # (mlane, m), already /gamma
    n_passes = 2 * m - 1
    n_chunks = -(-n_passes // 8)
    h2 = 8 * n_chunks
    c2s = _skew2(dmat, m, h2)                           # (h2, mlane)
    out = _dp2_call(c2s, m, mlane, n_passes, n_chunks)
    return jnp.float32(-gamma) * out[0, m - 1]          # == R[-2, -2] of padded R


@functools.partial(jax.jit, static_argnames=("gamma",))
def gmdtw3(x1, x2, x3, gamma=1.0):
    x1 = jnp.asarray(x1, jnp.float32)
    x2 = jnp.asarray(x2, jnp.float32)
    x3 = jnp.asarray(x3, jnp.float32)
    m, _ = x1.shape
    msub = _round_up(m, 8)
    mlane = _round_up(m, 128)
    inv_g = 1.0 / float(gamma)
    x1p = jnp.pad(x1, ((0, msub - m), (0, 0)))
    x2p = jnp.pad(x2, ((0, mlane - m), (0, 0)))
    d12 = _pairwise_call(x1p, x2p.T, inv_g)             # (msub, mlane)
    d13 = _pairwise_call(x1p, x3.T, inv_g)              # (msub, m)
    d23 = _pairwise_call(x2p, x3.T, inv_g)              # (mlane, m)
    k_tot = 3 * m - 3
    h13 = _round_up(k_tot + mlane, 8)
    h23 = _round_up(k_tot + msub, 8)
    b13 = _skew_antidiag(d13, m, k_tot, h13)            # (h13, msub)
    b23 = _skew_antidiag(d23, m, k_tot, h23)            # (h23, mlane)
    plane = _dp3_call(d12, b13, b23, m, msub, mlane)
    return jnp.float32(-gamma) * plane[m - 1, m - 1]    # == R[-2, -2, -2]


class GMDTW:
    """JAX/Pallas equivalent of the PyTorch GMDTW_CUDA module (forward only)."""

    def __init__(self, gamma=1.0, version=2):
        self.gamma = gamma
        self.version = version

    def __call__(self, y, X):
        if self.version == 2:
            return gmdtw2(y, X[0], gamma=self.gamma)
        elif self.version == 3:
            return gmdtw3(y, X[0], X[1], gamma=self.gamma)
        else:
            raise ValueError("Support version either 2 or 3!")


# ----------------------------------------------------------------------------
# Pure-numpy reference (direct transcription of the CUDA recurrences)
# ----------------------------------------------------------------------------
def _softmin_np(vals, gamma):
    r = -np.asarray(vals, np.float64) / gamma
    rmax = r.max()
    return -gamma * (math.log(np.sum(np.exp(r - rmax))) + rmax)


def ref_gmdtw2(x1, x2, gamma):
    x1 = np.asarray(x1, np.float64)
    x2 = np.asarray(x2, np.float64)
    m = x1.shape[0]
    C = ((x1[:, None, :] - x2[None, :, :]) ** 2).sum(-1)
    R = np.full((m + 1, m + 1), np.inf)
    R[0, 0] = 0.0
    for i in range(1, m + 1):
        for j in range(1, m + 1):
            R[i, j] = C[i - 1, j - 1] + _softmin_np(
                [R[i, j - 1], R[i - 1, j], R[i - 1, j - 1]], gamma)
    return R[m, m]


def ref_gmdtw3(x1, x2, x3, gamma):
    x1 = np.asarray(x1, np.float64)
    x2 = np.asarray(x2, np.float64)
    x3 = np.asarray(x3, np.float64)
    m = x1.shape[0]
    d12 = ((x1[:, None, :] - x2[None, :, :]) ** 2).sum(-1)
    d13 = ((x1[:, None, :] - x3[None, :, :]) ** 2).sum(-1)
    d23 = ((x2[:, None, :] - x3[None, :, :]) ** 2).sum(-1)
    C = d12[:, :, None] + d13[:, None, :] + d23[None, :, :]
    R = np.full((m + 1, m + 1, m + 1), np.inf)
    R[0, 0, 0] = 0.0
    for i in range(1, m + 1):
        for j in range(1, m + 1):
            for k in range(1, m + 1):
                vals = [R[i, j, k - 1], R[i, j - 1, k], R[i, j - 1, k - 1],
                        R[i - 1, j, k], R[i - 1, j, k - 1],
                        R[i - 1, j - 1, k], R[i - 1, j - 1, k - 1]]
                R[i, j, k] = C[i - 1, j - 1, k - 1] + _softmin_np(vals, gamma)
    return R[m, m, m]


# ----------------------------------------------------------------------------
if __name__ == "__main__":
    key = jax.random.PRNGKey(0)
    k1, k2, k3, k4, k5, k6, k7, k8 = jax.random.split(key, 8)

    def _close(a, b, tol=5e-3):
        a = float(a)
        b = float(b)
        return abs(a - b) <= tol * max(1.0, abs(a), abs(b))

    # version 2 + 3, small m / tiny d (VPU cost path, lane padding to 128)
    m, d = 8, 4
    y = jax.random.normal(k1, (m, d), dtype=jnp.float32)
    xa = jax.random.normal(k2, (m, d), dtype=jnp.float32)
    xb = jax.random.normal(k3, (m, d), dtype=jnp.float32)
    loss2 = GMDTW(gamma=1.0, version=2)(y, [xa])
    loss3 = GMDTW(gamma=0.8, version=3)(y, [xa, xb])

    # version 3, m not a multiple of 8 (exercises sublane padding + masks)
    m2, d2 = 10, 3
    y2 = jax.random.normal(k4, (m2, d2), dtype=jnp.float32)
    xc = jax.random.normal(k5, (m2, d2), dtype=jnp.float32)
    xd = jax.random.normal(k6, (m2, d2), dtype=jnp.float32)
    loss3b = GMDTW(gamma=1.3, version=3)(y2, [xc, xd])

    # version 2, lane-aligned m and larger d (MXU cost path, chunked DP2)
    mb, db = 128, 64
    yb = jax.random.normal(k7, (mb, db), dtype=jnp.float32)
    xe = jax.random.normal(k8, (mb, db), dtype=jnp.float32)
    loss2b = GMDTW(gamma=0.5, version=2)(yb, [xe])

    jax.block_until_ready((loss2, loss3, loss3b, loss2b))

    r2 = ref_gmdtw2(np.asarray(y), np.asarray(xa), 1.0)
    r3 = ref_gmdtw3(np.asarray(y), np.asarray(xa), np.asarray(xb), 0.8)
    r3b = ref_gmdtw3(np.asarray(y2), np.asarray(xc), np.asarray(xd), 1.3)
    r2b = ref_gmdtw2(np.asarray(yb), np.asarray(xe), 0.5)

    assert _close(loss2, r2), (float(loss2), r2)
    assert _close(loss3, r3), (float(loss3), r3)
    assert _close(loss3b, r3b), (float(loss3b), r3b)
    assert _close(loss2b, r2b), (float(loss2b), r2b)

    print("KERNEL_OK")
</pallas_src>

<mosaic_0001>
module attributes {stable_mosaic.version = 11 : i64} {
  func.func @_pairwise_kernel(%arg0: memref<128x4xf32, #tpu.memory_space<vmem>>, %arg1: memref<4x8xf32, #tpu.memory_space<vmem>>, %arg2: memref<128x8xf32, #tpu.memory_space<vmem>>) attributes {dimension_semantics = [], scalar_prefetch = 0 : i64, scratch_operands = 0 : i64, tpu.core_type = #tpu.core_type<tc>} {
    %c0 = arith.constant 0 : index
    %c0_0 = arith.constant 0 : index
    %0 = vector.load %arg0[%c0, %c0_0] : memref<128x4xf32, #tpu.memory_space<vmem>>, vector<128x4xf32>
    %c0_1 = arith.constant 0 : index
    %c0_2 = arith.constant 0 : index
    %1 = vector.load %arg1[%c0_1, %c0_2] : memref<4x8xf32, #tpu.memory_space<vmem>>, vector<4x8xf32>
    %cst = arith.constant 0.000000e+00 : f32
    %2 = vector.broadcast %cst : f32 to vector<128x8xf32>
    %3 = vector.extract_strided_slice %0 {offsets = [0, 0], sizes = [128, 1], strides = [1, 1]} : vector<128x4xf32> to vector<128x1xf32>
    %4 = vector.extract_strided_slice %1 {offsets = [0, 0], sizes = [1, 8], strides = [1, 1]} : vector<4x8xf32> to vector<1x8xf32>
    %5 = vector.broadcast %3 : vector<128x1xf32> to vector<128x8xf32>
    %6 = vector.broadcast %4 : vector<1x8xf32> to vector<128x8xf32>
    %7 = arith.subf %5, %6 : vector<128x8xf32>
    %8 = arith.mulf %7, %7 : vector<128x8xf32>
    %9 = arith.addf %2, %8 : vector<128x8xf32>
    %10 = vector.extract_strided_slice %0 {offsets = [0, 1], sizes = [128, 1], strides = [1, 1]} : vector<128x4xf32> to vector<128x1xf32>
    %11 = vector.extract_strided_slice %1 {offsets = [1, 0], sizes = [1, 8], strides = [1, 1]} : vector<4x8xf32> to vector<1x8xf32>
    %12 = vector.broadcast %10 : vector<128x1xf32> to vector<128x8xf32>
    %13 = vector.broadcast %11 : vector<1x8xf32> to vector<128x8xf32>
    %14 = arith.subf %12, %13 : vector<128x8xf32>
    %15 = arith.mulf %14, %14 : vector<128x8xf32>
    %16 = arith.addf %9, %15 : vector<128x8xf32>
    %17 = vector.extract_strided_slice %0 {offsets = [0, 2], sizes = [128, 1], strides = [1, 1]} : vector<128x4xf32> to vector<128x1xf32>
    %18 = vector.extract_strided_slice %1 {offsets = [2, 0], sizes = [1, 8], strides = [1, 1]} : vector<4x8xf32> to vector<1x8xf32>
    %19 = vector.broadcast %17 : vector<128x1xf32> to vector<128x8xf32>
    %20 = vector.broadcast %18 : vector<1x8xf32> to vector<128x8xf32>
    %21 = arith.subf %19, %20 : vector<128x8xf32>
    %22 = arith.mulf %21, %21 : vector<128x8xf32>
    %23 = arith.addf %16, %22 : vector<128x8xf32>
    %24 = vector.extract_strided_slice %0 {offsets = [0, 3], sizes = [128, 1], strides = [1, 1]} : vector<128x4xf32> to vector<128x1xf32>
    %25 = vector.extract_strided_slice %1 {offsets = [3, 0], sizes = [1, 8], strides = [1, 1]} : vector<4x8xf32> to vector<1x8xf32>
    %26 = vector.broadcast %24 : vector<128x1xf32> to vector<128x8xf32>
    %27 = vector.broadcast %25 : vector<1x8xf32> to vector<128x8xf32>
    %28 = arith.subf %26, %27 : vector<128x8xf32>
    %29 = arith.mulf %28, %28 : vector<128x8xf32>
    %30 = arith.addf %23, %29 : vector<128x8xf32>
    %cst_3 = arith.constant 1.000000e+00 : f32
    %31 = vector.broadcast %cst_3 : f32 to vector<128x8xf32>
    %32 = arith.mulf %31, %30 : vector<128x8xf32>
    %c0_4 = arith.constant 0 : index
    %c0_5 = arith.constant 0 : index
    %33 = vector.load %arg2[%c0_4, %c0_5] : memref<128x8xf32, #tpu.memory_space<vmem>>, vector<128x8xf32>
    tpu.vector_store %arg2[%c0_4, %c0_5], %32 {strides = array<i32>} : memref<128x8xf32, #tpu.memory_space<vmem>>, vector<128x8xf32>,
    return
  }
}

module attributes {stable_mosaic.version = 11 : i64} {
  func.func @_dp2_kernel(%arg0: memref<16x128xf32, #tpu.memory_space<vmem>>, %arg1: memref<1x128xf32, #tpu.memory_space<vmem>>) attributes {dimension_semantics = [], scalar_prefetch = 0 : i64, scratch_operands = 0 : i64, tpu.core_type = #tpu.core_type<tc>} {
    %0 = tpu.iota {dimensions = array<i32: 1>} : vector<1x128xi32>
    %c0_i32 = arith.constant 0 : i32
    %1 = vector.broadcast %c0_i32 : i32 to vector<1x128xi32>
    %2 = arith.cmpi eq, %0, %1 : vector<1x128xi32>
    %c8_i32 = arith.constant 8 : i32
    %3 = vector.broadcast %c8_i32 : i32 to vector<1x128xi32>
    %4 = arith.cmpi slt, %0, %3 : vector<1x128xi32>
    %cst = arith.constant -1.000000e+30 : f32
    %5 = vector.broadcast %cst : f32 to vector<1x128xf32>
    %c0_i32_0 = arith.constant 0 : i32
    %c2_i32 = arith.constant 2 : i32
    %6 = arith.addi %c0_i32_0, %c2_i32 : i32
    %c1_i32 = arith.constant 1 : i32
    %7:3 = scf.for %arg2 = %c0_i32_0 to %6 step %c1_i32 iter_args(%arg3 = %5, %arg4 = %5, %arg5 = %5) -> (vector<1x128xf32>, vector<1x128xf32>, vector<1x128xf32>)  : i32 {
      %c8_i32_3 = arith.constant 8 : i32
      %9 = arith.muli %arg2, %c8_i32_3 : i32
      %10 = tpu.assume_multiple %9, 8 : i32
      %11 = arith.index_cast %10 : i32 to index
      %c0_4 = arith.constant 0 : index
      %12 = vector.load %arg0[%11, %c0_4] : memref<16x128xf32, #tpu.memory_space<vmem>>, vector<8x128xf32>
      %c8_i32_5 = arith.constant 8 : i32
      %13 = arith.muli %arg2, %c8_i32_5 : i32
      %c0_i32_6 = arith.constant 0 : i32
      %14 = arith.addi %13, %c0_i32_6 : i32
      %15 = vector.extract_strided_slice %12 {offsets = [0, 0], sizes = [1, 128], strides = [1, 1]} : vector<8x128xf32> to vector<1x128xf32>
      %c1_i32_7 = arith.constant 1 : i32
      %16 = tpu.dynamic_rotate %arg3 by %c1_i32_7 dim 1 : vector<1x128xf32>, i32 -> vector<1x128xf32>
      %cst_8 = arith.constant -1.000000e+30 : f32
      %17 = vector.broadcast %cst_8 : f32 to vector<1x128xf32>
      %18 = arith.select %2, %17, %16 : vector<1x128xi1>, vector<1x128xf32>
      %c1_i32_9 = arith.constant 1 : i32
      %19 = tpu.dynamic_rotate %arg4 by %c1_i32_9 dim 1 : vector<1x128xf32>, i32 -> vector<1x128xf32>
      %cst_10 = arith.constant -1.000000e+30 : f32
      %20 = vector.broadcast %cst_10 : f32 to vector<1x128xf32>
      %21 = arith.select %2, %20, %19 : vector<1x128xi1>, vector<1x128xf32>
      %c0_i32_11 = arith.constant 0 : i32
      %22 = arith.cmpi eq, %arg2, %c0_i32_11 : i32
      %23 = vector.broadcast %22 : i1 to vector<1x128xi1>
      %24 = arith.andi %2, %23 : vector<1x128xi1>
      %cst_12 = arith.constant 0.000000e+00 : f32
      %25 = vector.broadcast %cst_12 : f32 to vector<1x128xf32>
      %26 = arith.select %24, %25, %21 : vector<1x128xi1>, vector<1x128xf32>
      %27 = arith.maximumf %arg3, %18 : vector<1x128xf32>
      %28 = arith.maximumf %27, %26 : vector<1x128xf32>
      %29 = arith.subf %arg3, %28 : vector<1x128xf32>
      %30 = math.exp %29 : vector<1x128xf32>
      %31 = arith.subf %18, %28 : vector<1x128xf32>
      %32 = math.exp %31 : vector<1x128xf32>
      %33 = arith.addf %30, %32 : vector<1x128xf32>
      %34 = arith.subf %26, %28 : vector<1x128xf32>
      %35 = math.exp %34 : vector<1x128xf32>
      %36 = arith.addf %33, %35 : vector<1x128xf32>
      %37 = math.log %36 : vector<1x128xf32>
      %38 = arith.addf %37, %28 : vector<1x128xf32>
      %39 = arith.subf %38, %15 : vector<1x128xf32>
      %40 = vector.broadcast %14 : i32 to vector<1x128xi32>
      %41 = arith.subi %40, %0 : vector<1x128xi32>
      %c0_i32_13 = arith.constant 0 : i32
      %42 = vector.broadcast %c0_i32_13 : i32 to vector<1x128xi32>
      %43 = arith.cmpi sge, %41, %42 : vector<1x128xi32>
      %c8_i32_14 = arith.constant 8 : i32
      %44 = vector.broadcast %c8_i32_14 : i32 to vector<1x128xi32>
      %45 = arith.cmpi slt, %41, %44 : vector<1x128xi32>
      %46 = arith.andi %43, %45 : vector<1x128xi1>
      %47 = arith.andi %46, %4 : vector<1x128xi1>
      %cst_15 = arith.constant -1.000000e+30 : f32
      %48 = vector.broadcast %cst_15 : f32 to vector<1x128xf32>
      %49 = arith.select %47, %39, %48 : vector<1x128xi1>, vector<1x128xf32>
      %c8_i32_16 = arith.constant 8 : i32
      %50 = arith.muli %arg2, %c8_i32_16 : i32
      %c1_i32_17 = arith.constant 1 : i32
      %51 = arith.addi %50, %c1_i32_17 : i32
      %52 = vector.extract_strided_slice %12 {offsets = [1, 0], sizes = [1, 128], strides = [1, 1]} : vector<8x128xf32> to vector<1x128xf32>
      %c1_i32_18 = arith.constant 1 : i32
      %53 = tpu.dynamic_rotate %49 by %c1_i32_18 dim 1 : vector<1x128xf32>, i32 -> vector<1x128xf32>
      %cst_19 = arith.constant -1.000000e+30 : f32
      %54 = vector.broadcast %cst_19 : f32 to vector<1x128xf32>
      %55 = arith.select %2, %54, %53 : vector<1x128xi1>, vector<1x128xf32>
      %c1_i32_20 = arith.constant 1 : i32
      %56 = tpu.dynamic_rotate %arg3 by %c1_i32_20 dim 1 : vector<1x128xf32>, i32 -> vector<1x128xf32>
      %cst_21 = arith.constant -1.000000e+30 : f32
      %57 = vector.broadcast %cst_21 : f32 to vector<1x128xf32>
      %58 = arith.select %2, %57, %56 : vector<1x128xi1>, vector<1x128xf32>
      %59 = arith.maximumf %49, %55 : vector<1x128xf32>
      %60 = arith.maximumf %59, %58 : vector<1x128xf32>
      %61 = arith.subf %49, %60 : vector<1x128xf32>
      %62 = math.exp %61 : vector<1x128xf32>
      %63 = arith.subf %55, %60 : vector<1x128xf32>
      %64 = math.exp %63 : vector<1x128xf32>
      %65 = arith.addf %62, %64 : vector<1x128xf32>
      %66 = arith.subf %58, %60 : vector<1x128xf32>
      %67 = math.exp %66 : vector<1x128xf32>
      %68 = arith.addf %65, %67 : vector<1x128xf32>
      %69 = math.log %68 : vector<1x128xf32>
      %70 = arith.addf %69, %60 : vector<1x128xf32>
      %71 = arith.subf %70, %52 : vector<1x128xf32>
      %72 = vector.broadcast %51 : i32 to vector<1x128xi32>
      %73 = arith.subi %72, %0 : vector<1x128xi32>
      %c0_i32_22 = arith.constant 0 : i32
      %74 = vector.broadcast %c0_i32_22 : i32 to vector<1x128xi32>
      %75 = arith.cmpi sge, %73, %74 : vector<1x128xi32>
      %c8_i32_23 = arith.constant 8 : i32
      %76 = vector.broadcast %c8_i32_23 : i32 to vector<1x128xi32>
      %77 = arith.cmpi slt, %73, %76 : vector<1x128xi32>
      %78 = arith.andi %75, %77 : vector<1x128xi1>
      %79 = arith.andi %78, %4 : vector<1x128xi1>
      %cst_24 = arith.constant -1.000000e+30 : f32
      %80 = vector.broadcast %cst_24 : f32 to vector<1x128xf32>
      %81 = arith.select %79, %71, %80 : vector<1x128xi1>, vector<1x128xf32>
      %c8_i32_25 = arith.constant 8 : i32
      %82 = arith.muli %arg2, %c8_i32_25 : i32
      %c2_i32_26 = arith.constant 2 : i32
      %83 = arith.addi %82, %c2_i32_26 : i32
      %84 = vector.extract_strided_slice %12 {offsets = [2, 0], sizes = [1, 128], strides = [1, 1]} : vector<8x128xf32> to vector<1x128xf32>
      %c1_i32_27 = arith.constant 1 : i32
      %85 = tpu.dynamic_rotate %81 by %c1_i32_27 dim 1 : vector<1x128xf32>, i32 -> vector<1x128xf32>
      %cst_28 = arith.constant -1.000000e+30 : f32
      %86 = vector.broadcast %cst_28 : f32 to vector<1x128xf32>
      %87 = arith.select %2, %86, %85 : vector<1x128xi1>, vector<1x128xf32>
      %c1_i32_29 = arith.constant 1 : i32
      %88 = tpu.dynamic_rotate %49 by %c1_i32_29 dim 1 : vector<1x128xf32>, i32 -> vector<1x128xf32>
      %cst_30 = arith.constant -1.000000e+30 : f32
      %89 = vector.broadcast %cst_30 : f32 to vector<1x128xf32>
      %90 = arith.select %2, %89, %88 : vector<1x128xi1>, vector<1x128xf32>
      %91 = arith.maximumf %81, %87 : vector<1x128xf32>
      %92 = arith.maximumf %91, %90 : vector<1x128xf32>
      %93 = arith.subf %81, %92 : vector<1x128xf32>
      %94 = math.exp %93 : vector<1x128xf32>
      %95 = arith.subf %87, %92 : vector<1x128xf32>
      %96 = math.exp %95 : vector<1x128xf32>
      %97 = arith.addf %94, %96 : vector<1x128xf32>
      %98 = arith.subf %90, %92 : vector<1x128xf32>
      %99 = math.exp %98 : vector<1x128xf32>
      %100 = arith.addf %97, %99 : vector<1x128xf32>
      %101 = math.log %100 : vector<1x128xf32>
      %102 = arith.addf %101, %92 : vector<1x128xf32>
      %103 = arith.subf %102, %84 : vector<1x128xf32>
      %104 = vector.broadcast %83 : i32 to vector<1x128xi32>
      %105 = arith.subi %104, %0 : vector<1x128xi32>
      %c0_i32_31 = arith.constant 0 : i32
      %106 = vector.broadcast %c0_i32_31 : i32 to vector<1x128xi32>
      %107 = arith.cmpi sge, %105, %106 : vector<1x128xi32>
      %c8_i32_32 = arith.constant 8 : i32
      %108 = vector.broadcast %c8_i32_32 : i32 to vector<1x128xi32>
      %109 = arith.cmpi slt, %105, %108 : vector<1x128xi32>
      %110 = arith.andi %107, %109 : vector<1x128xi1>
      %111 = arith.andi %110, %4 : vector<1x128xi1>
      %cst_33 = arith.constant -1.000000e+30 : f32
      %112 = vector.broadcast %cst_33 : f32 to vector<1x128xf32>
      %113 = arith.select %111, %103, %112 : vector<1x128xi1>, vector<1x128xf32>
      %c8_i32_34 = arith.constant 8 : i32
      %114 = arith.muli %arg2, %c8_i32_34 : i32
      %c3_i32 = arith.constant 3 : i32
      %115 = arith.addi %114, %c3_i32 : i32
      %116 = vector.extract_strided_slice %12 {offsets = [3, 0], sizes = [1, 128], strides = [1, 1]} : vector<8x128xf32> to vector<1x128xf32>
      %c1_i32_35 = arith.constant 1 : i32
      %117 = tpu.dynamic_rotate %113 by %c1_i32_35 dim 1 : vector<1x128xf32>, i32 -> vector<1x128xf32>
      %cst_36 = arith.constant -1.000000e+30 : f32
      %118 = vector.broadcast %cst_36 : f32 to vector<1x128xf32>
      %119 = arith.select %2, %118, %117 : vector<1x128xi1>, vector<1x128xf32>
      %c1_i32_37 = arith.constant 1 : i32
      %120 = tpu.dynamic_rotate %81 by %c1_i32_37 dim 1 : vector<1x128xf32>, i32 -> vector<1x128xf32>
      %cst_38 = arith.constant -1.000000e+30 : f32
      %121 = vector.broadcast %cst_38 : f32 to vector<1x128xf32>
      %122 = arith.select %2, %121, %120 : vector<1x128xi1>, vector<1x128xf32>
      %123 = arith.maximumf %113, %119 : vector<1x128xf32>
      %124 = arith.maximumf %123, %122 : vector<1x128xf32>
      %125 = arith.subf %113, %124 : vector<1x128xf32>
      %126 = math.exp %125 : vector<1x128xf32>
      %127 = arith.subf %119, %124 : vector<1x128xf32>
      %128 = math.exp %127 : vector<1x128xf32>
      %129 = arith.addf %126, %128 : vector<1x128xf32>
      %130 = arith.subf %122, %124 : vector<1x128xf32>
      %131 = math.exp %130 : vector<1x128xf32>
      %132 = arith.addf %129, %131 : vector<1x128xf32>
      %133 = math.log %132 : vector<1x128xf32>
      %134 = arith.addf %133, %124 : vector<1x128xf32>
      %135 = arith.subf %134, %116 : vector<1x128xf32>
      %136 = vector.broadcast %115 : i32 to vector<1x128xi32>
      %137 = arith.subi %136, %0 : vector<1x128xi32>
      %c0_i32_39 = arith.constant 0 : i32
      %138 = vector.broadcast %c0_i32_39 : i32 to vector<1x128xi32>
      %139 = arith.cmpi sge, %137, %138 : vector<1x128xi32>
      %c8_i32_40 = arith.constant 8 : i32
      %140 = vector.broadcast %c8_i32_40 : i32 to vector<1x128xi32>
      %141 = arith.cmpi slt, %137, %140 : vector<1x128xi32>
      %142 = arith.andi %139, %141 : vector<1x128xi1>
      %143 = arith.andi %142, %4 : vector<1x128xi1>
      %cst_41 = arith.constant -1.000000e+30 : f32
      %144 = vector.broadcast %cst_41 : f32 to vector<1x128xf32>
      %145 = arith.select %143, %135, %144 : vector<1x128xi1>, vector<1x128xf32>
      %c8_i32_42 = arith.constant 8 : i32
      %146 = arith.muli %arg2, %c8_i32_42 : i32
      %c4_i32 = arith.constant 4 : i32
      %147 = arith.addi %146, %c4_i32 : i32
      %148 = vector.extract_strided_slice %12 {offsets = [4, 0], sizes = [1, 128], strides = [1, 1]} : vector<8x128xf32> to vector<1x128xf32>
      %c1_i32_43 = arith.constant 1 : i32
      %149 = tpu.dynamic_rotate %145 by %c1_i32_43 dim 1 : vector<1x128xf32>, i32 -> vector<1x128xf32>
      %cst_44 = arith.constant -1.000000e+30 : f32
      %150 = vector.broadcast %cst_44 : f32 to vector<1x128xf32>
      %151 = arith.select %2, %150, %149 : vector<1x128xi1>, vector<1x128xf32>
      %c1_i32_45 = arith.constant 1 : i32
      %152 = tpu.dynamic_rotate %113 by %c1_i32_45 dim 1 : vector<1x128xf32>, i32 -> vector<1x128xf32>
      %cst_46 = arith.constant -1.000000e+30 : f32
      %153 = vector.broadcast %cst_46 : f32 to vector<1x128xf32>
      %154 = arith.select %2, %153, %152 : vector<1x128xi1>, vector<1x128xf32>
      %155 = arith.maximumf %145, %151 : vector<1x128xf32>
      %156 = arith.maximumf %155, %154 : vector<1x128xf32>
      %157 = arith.subf %145, %156 : vector<1x128xf32>
      %158 = math.exp %157 : vector<1x128xf32>
      %159 = arith.subf %151, %156 : vector<1x128xf32>
      %160 = math.exp %159 : vector<1x128xf32>
      %161 = arith.addf %158, %160 : vector<1x128xf32>
      %162 = arith.subf %154, %156 : vector<1x128xf32>
      %163 = math.exp %162 : vector<1x128xf32>
      %164 = arith.addf %161, %163 : vector<1x128xf32>
      %165 = math.log %164 : vector<1x128xf32>
      %166 = arith.addf %165, %156 : vector<1x128xf32>
      %167 = arith.subf %166, %148 : vector<1x128xf32>
      %168 = vector.broadcast %147 : i32 to vector<1x128xi32>
      %169 = arith.subi %168, %0 : vector<1x128xi32>
      %c0_i32_47 = arith.constant 0 : i32
      %170 = vector.broadcast %c0_i32_47 : i32 to vector<1x128xi32>
      %171 = arith.cmpi sge, %169, %170 : vector<1x128xi32>
      %c8_i32_48 = arith.constant 8 : i32
      %172 = vector.broadcast %c8_i32_48 : i32 to vector<1x128xi32>
      %173 = arith.cmpi slt, %169, %172 : vector<1x128xi32>
      %174 = arith.andi %171, %173 : vector<1x128xi1>
      %175 = arith.andi %174, %4 : vector<1x128xi1>
      %cst_49 = arith.constant -1.000000e+30 : f32
      %176 = vector.broadcast %cst_49 : f32 to vector<1x128xf32>
      %177 = arith.select %175, %167, %176 : vector<1x128xi1>, vector<1x128xf32>
      %c8_i32_50 = arith.constant 8 : i32
      %178 = arith.muli %arg2, %c8_i32_50 : i32
      %c5_i32 = arith.constant 5 : i32
      %179 = arith.addi %178, %c5_i32 : i32
      %180 = vector.extract_strided_slice %12 {offsets = [5, 0], sizes = [1, 128], strides = [1, 1]} : vector<8x128xf32> to vector<1x128xf32>
      %c1_i32_51 = arith.constant 1 : i32
      %181 = tpu.dynamic_rotate %177 by %c1_i32_51 dim 1 : vector<1x128xf32>, i32 -> vector<1x128xf32>
      %cst_52 = arith.constant -1.000000e+30 : f32
      %182 = vector.broadcast %cst_52 : f32 to vector<1x128xf32>
      %183 = arith.select %2, %182, %181 : vector<1x128xi1>, vector<1x128xf32>
      %c1_i32_53 = arith.constant 1 : i32
      %184 = tpu.dynamic_rotate %145 by %c1_i32_53 dim 1 : vector<1x128xf32>, i32 -> vector<1x128xf32>
      %cst_54 = arith.constant -1.000000e+30 : f32
      %185 = vector.broadcast %cst_54 : f32 to vector<1x128xf32>
      %186 = arith.select %2, %185, %184 : vector<1x128xi1>, vector<1x128xf32>
      %187 = arith.maximumf %177, %183 : vector<1x128xf32>
      %188 = arith.maximumf %187, %186 : vector<1x128xf32>
      %189 = arith.subf %177, %188 : vector<1x128xf32>
      %190 = math.exp %189 : vector<1x128xf32>
      %191 = arith.subf %183, %188 : vector<1x128xf32>
      %192 = math.exp %191 : vector<1x128xf32>
      %193 = arith.addf %190, %192 : vector<1x128xf32>
      %194 = arith.subf %186, %188 : vector<1x128xf32>
      %195 = math.exp %194 : vector<1x128xf32>
      %196 = arith.addf %193, %195 : vector<1x128xf32>
      %197 = math.log %196 : vector<1x128xf32>
      %198 = arith.addf %197, %188 : vector<1x128xf32>
      %199 = arith.subf %198, %180 : vector<1x128xf32>
      %200 = vector.broadcast %179 : i32 to vector<1x128xi32>
      %201 = arith.subi %200, %0 : vector<1x128xi32>
      %c0_i32_55 = arith.constant 0 : i32
      %202 = vector.broadcast %c0_i32_55 : i32 to vector<1x128xi32>
      %203 = arith.cmpi sge, %201, %202 : vector<1x128xi32>
      %c8_i32_56 = arith.constant 8 : i32
      %204 = vector.broadcast %c8_i32_56 : i32 to vector<1x128xi32>
      %205 = arith.cmpi slt, %201, %204 : vector<1x128xi32>
      %206 = arith.andi %203, %205 : vector<1x128xi1>
      %207 = arith.andi %206, %4 : vector<1x128xi1>
      %cst_57 = arith.constant -1.000000e+30 : f32
      %208 = vector.broadcast %cst_57 : f32 to vector<1x128xf32>
      %209 = arith.select %207, %199, %208 : vector<1x128xi1>, vector<1x128xf32>
      %c8_i32_58 = arith.constant 8 : i32
      %210 = arith.muli %arg2, %c8_i32_58 : i32
      %c6_i32 = arith.constant 6 : i32
      %211 = arith.addi %210, %c6_i32 : i32
      %212 = vector.extract_strided_slice %12 {offsets = [6, 0], sizes = [1, 128], strides = [1, 1]} : vector<8x128xf32> to vector<1x128xf32>
      %c1_i32_59 = arith.constant 1 : i32
      %213 = tpu.dynamic_rotate %209 by %c1_i32_59 dim 1 : vector<1x128xf32>, i32 -> vector<1x128xf32>
      %cst_60 = arith.constant -1.000000e+30 : f32
      %214 = vector.broadcast %cst_60 : f32 to vector<1x128xf32>
      %215 = arith.select %2, %214, %213 : vector<1x128xi1>, vector<1x128xf32>
      %c1_i32_61 = arith.constant 1 : i32
      %216 = tpu.dynamic_rotate %177 by %c1_i32_61 dim 1 : vector<1x128xf32>, i32 -> vector<1x128xf32>
      %cst_62 = arith.constant -1.000000e+30 : f32
      %217 = vector.broadcast %cst_62 : f32 to vector<1x128xf32>
      %218 = arith.select %2, %217, %216 : vector<1x128xi1>, vector<1x128xf32>
      %219 = arith.maximumf %209, %215 : vector<1x128xf32>
      %220 = arith.maximumf %219, %218 : vector<1x128xf32>
      %221 = arith.subf %209, %220 : vector<1x128xf32>
      %222 = math.exp %221 : vector<1x128xf32>
      %223 = arith.subf %215, %220 : vector<1x128xf32>
      %224 = math.exp %223 : vector<1x128xf32>
      %225 = arith.addf %222, %224 : vector<1x128xf32>
      %226 = arith.subf %218, %220 : vector<1x128xf32>
      %227 = math.exp %226 : vector<1x128xf32>
      %228 = arith.addf %225, %227 : vector<1x128xf32>
      %229 = math.log %228 : vector<1x128xf32>
      %230 = arith.addf %229, %220 : vector<1x128xf32>
      %231 = arith.subf %230, %212 : vector<1x128xf32>
      %232 = vector.broadcast %211 : i32 to vector<1x128xi32>
      %233 = arith.subi %232, %0 : vector<1x128xi32>
      %c0_i32_63 = arith.constant 0 : i32
      %234 = vector.broadcast %c0_i32_63 : i32 to vector<1x128xi32>
      %235 = arith.cmpi sge, %233, %234 : vector<1x128xi32>
      %c8_i32_64 = arith.constant 8 : i32
      %236 = vector.broadcast %c8_i32_64 : i32 to vector<1x128xi32>
      %237 = arith.cmpi slt, %233, %236 : vector<1x128xi32>
      %238 = arith.andi %235, %237 : vector<1x128xi1>
      %239 = arith.andi %238, %4 : vector<1x128xi1>
      %cst_65 = arith.constant -1.000000e+30 : f32
      %240 = vector.broadcast %cst_65 : f32 to vector<1x128xf32>
      %241 = arith.select %239, %231, %240 : vector<1x128xi1>, vector<1x128xf32>
      %c1_i32_66 = arith.constant 1 : i32
      %242 = arith.cmpi eq, %arg2, %c1_i32_66 : i32
      %243 = arith.select %242, %241, %arg5 : vector<1x128xf32>
      %c8_i32_67 = arith.constant 8 : i32
      %244 = arith.muli %arg2, %c8_i32_67 : i32
      %c7_i32 = arith.constant 7 : i32
      %245 = arith.addi %244, %c7_i32 : i32
      %246 = vector.extract_strided_slice %12 {offsets = [7, 0], sizes = [1, 128], strides = [1, 1]} : vector<8x128xf32> to vector<1x128xf32>
      %c1_i32_68 = arith.constant 1 : i32
      %247 = tpu.dynamic_rotate %241 by %c1_i32_68 dim 1 : vector<1x128xf32>, i32 -> vector<1x128xf32>
      %cst_69 = arith.constant -1.000000e+30 : f32
      %248 = vector.broadcast %cst_69 : f32 to vector<1x128xf32>
      %249 = arith.select %2, %248, %247 : vector<1x128xi1>, vector<1x128xf32>
      %c1_i32_70 = arith.constant 1 : i32
      %250 = tpu.dynamic_rotate %209 by %c1_i32_70 dim 1 : vector<1x128xf32>, i32 -> vector<1x128xf32>
      %cst_71 = arith.constant -1.000000e+30 : f32
      %251 = vector.broadcast %cst_71 : f32 to vector<1x128xf32>
      %252 = arith.select %2, %251, %250 : vector<1x128xi1>, vector<1x128xf32>
      %253 = arith.maximumf %241, %249 : vector<1x128xf32>
      %254 = arith.maximumf %253, %252 : vector<1x128xf32>
      %255 = arith.subf %241, %254 : vector<1x128xf32>
      %256 = math.exp %255 : vector<1x128xf32>
      %257 = arith.subf %249, %254 : vector<1x128xf32>
      %258 = math.exp %257 : vector<1x128xf32>
      %259 = arith.addf %256, %258 : vector<1x128xf32>
      %260 = arith.subf %252, %254 : vector<1x128xf32>
      %261 = math.exp %260 : vector<1x128xf32>
      %262 = arith.addf %259, %261 : vector<1x128xf32>
      %263 = math.log %262 : vector<1x128xf32>
      %264 = arith.addf %263, %254 : vector<1x128xf32>
      %265 = arith.subf %264, %246 : vector<1x128xf32>
      %266 = vector.broadcast %245 : i32 to vector<1x128xi32>
      %267 = arith.subi %266, %0 : vector<1x128xi32>
      %c0_i32_72 = arith.constant 0 : i32
      %268 = vector.broadcast %c0_i32_72 : i32 to vector<1x128xi32>
      %269 = arith.cmpi sge, %267, %268 : vector<1x128xi32>
      %c8_i32_73 = arith.constant 8 : i32
      %270 = vector.broadcast %c8_i32_73 : i32 to vector<1x128xi32>
      %271 = arith.cmpi slt, %267, %270 : vector<1x128xi32>
      %272 = arith.andi %269, %271 : vector<1x128xi1>
      %273 = arith.andi %272, %4 : vector<1x128xi1>
      %cst_74 = arith.constant -1.000000e+30 : f32
      %274 = vector.broadcast %cst_74 : f32 to vector<1x128xf32>
      %275 = arith.select %273, %265, %274 : vector<1x128xi1>, vector<1x128xf32>
      scf.yield %275, %241, %243 : vector<1x128xf32>, vector<1x128xf32>, vector<1x128xf32>
    }
    %c2_i32_1 = arith.constant 2 : i32
    %c0 = arith.constant 0 : index
    %c0_2 = arith.constant 0 : index
    %8 = vector.load %arg1[%c0, %c0_2] : memref<1x128xf32, #tpu.memory_space<vmem>>, vector<1x128xf32>
    tpu.vector_store %arg1[%c0, %c0_2], %7#2 {strides = array<i32>} : memref<1x128xf32, #tpu.memory_space<vmem>>, vector<1x128xf32>,
    return
  }
}

</mosaic_0001>

<llo_original>
// kernel: gmdtw2.2
$region0: #{gmdtw2.2}
  #allocation0 [shape = 'u32[]', space=smem, size = 0x4, offset = 0x4, fixed_abs, tag = 'smem constant byte address 0x4 - core index']
  #allocation1 [shape = 'u32[144,128]{1,0:T(1,128)}', space=vmem, size = 0x12000, scoped, tag = 'internal scratch']
  %s0 = inlined_call_operand.vmem [shape: f32[128,4], index: 0, kind: input, shape index: {}]
  %s1 = inlined_call_operand.vmem [shape: f32[4,8], index: 1, kind: input, shape index: {}]
  %s2 = inlined_call_operand.vmem [shape: f32[128,8], index: 2, kind: output, shape index: {}]
  %s3 = sld [smem:[#allocation0]]
  $region18: #{gmdtw2.2} parent=0
    _
  %s5 = ssub.s32 1, %s3
  %s6 = scalar_select 0, %s5, %s3
  // Predicated region
  $region2: #{gmdtw2.2} parent=0 // pred_check
    _
  $region3: #{gmdtw2.2} parent=0 // pred_check_branch
    %8 = sbr.rel (0) target = $region5
  $region4: #{gmdtw2.2} parent=0 // pred_region
    _
  $region5: #{gmdtw2.2} parent=0 // pred_fallthru
    _
  // Predicated region
  $region6: #{gmdtw2.2} parent=0 // pred_check
    _
  $region7: #{gmdtw2.2} parent=0 // pred_check_branch
    %10 = sbr.rel (0) target = $region9
  $region8: #{gmdtw2.2} parent=0 // pred_region
    _
  $region9: #{gmdtw2.2} parent=0 // pred_fallthru
    _
  %v11 = vld [vmem:[%s0] sm:$0xff]
  %v12 = vld [vmem:[%s0 + $0x8] sm:$0xff]
  %v13 = vld [vmem:[%s0 + $0x10] sm:$0xff]
  %v14 = vld [vmem:[%s0 + $0x18] sm:$0xff]
  %v15 = vld [vmem:[%s0 + $0x20] sm:$0xff]
  %v16 = vld [vmem:[%s0 + $0x28] sm:$0xff]
  %v17 = vld [vmem:[%s0 + $0x30] sm:$0xff]
  %v18 = vld [vmem:[%s0 + $0x38] sm:$0xff]
  %v19 = vld [vmem:[%s0 + $0x40] sm:$0xff]
  %v20 = vld [vmem:[%s0 + $0x48] sm:$0xff]
  %v21 = vld [vmem:[%s0 + $0x50] sm:$0xff]
  %v22 = vld [vmem:[%s0 + $0x58] sm:$0xff]
  %v23 = vld [vmem:[%s0 + $0x60] sm:$0xff]
  %v24 = vld [vmem:[%s0 + $0x68] sm:$0xff]
  %v25 = vld [vmem:[%s0 + $0x70] sm:$0xff]
  %v26 = vld [vmem:[%s0 + $0x78] sm:$0xff]
  %v27 = vld [vmem:[%s1] sm:$0xf]
  %29 = vset.pattern.permute.xlu0 0
  %30 = vperm.xlu0 %29, %v11
  %v31 = vpop.permute.xlu0 %30
  %34 = vset.pattern.permute.xlu0 0
  %35 = vperm.xlu0 %34, %v12
  %v36 = vpop.permute.xlu0 %35
  %39 = vset.pattern.permute.xlu0 0
  %40 = vperm.xlu0 %39, %v13
  %v41 = vpop.permute.xlu0 %40
  %44 = vset.pattern.permute.xlu0 0
  %45 = vperm.xlu0 %44, %v14
  %v46 = vpop.permute.xlu0 %45
  %49 = vset.pattern.permute.xlu0 0
  %50 = vperm.xlu0 %49, %v15
  %v51 = vpop.permute.xlu0 %50
  %54 = vset.pattern.permute.xlu0 0
  %55 = vperm.xlu0 %54, %v16
  %v56 = vpop.permute.xlu0 %55
  %59 = vset.pattern.permute.xlu0 0
  %60 = vperm.xlu0 %59, %v17
  %v61 = vpop.permute.xlu0 %60
  %64 = vset.pattern.permute.xlu0 0
  %65 = vperm.xlu0 %64, %v18
  %v66 = vpop.permute.xlu0 %65
  %69 = vset.pattern.permute.xlu0 0
  %70 = vperm.xlu0 %69, %v19
  %v71 = vpop.permute.xlu0 %70
  %74 = vset.pattern.permute.xlu0 0
  %75 = vperm.xlu0 %74, %v20
  %v76 = vpop.permute.xlu0 %75
  %79 = vset.pattern.permute.xlu0 0
  %80 = vperm.xlu0 %79, %v21
  %v81 = vpop.permute.xlu0 %80
  %84 = vset.pattern.permute.xlu0 0
  %85 = vperm.xlu0 %84, %v22
  %v86 = vpop.permute.xlu0 %85
  %89 = vset.pattern.permute.xlu0 0
  %90 = vperm.xlu0 %89, %v23
  %v91 = vpop.permute.xlu0 %90
  %94 = vset.pattern.permute.xlu0 0
  %95 = vperm.xlu0 %94, %v24
  %v96 = vpop.permute.xlu0 %95
  %99 = vset.pattern.permute.xlu0 0
  %100 = vperm.xlu0 %99, %v25
  %v101 = vpop.permute.xlu0 %100
  %104 = vset.pattern.permute.xlu0 0
  %105 = vperm.xlu0 %104, %v26
  %v106 = vpop.permute.xlu0 %105
  %v108 = vlaneseq
  %v109 = vshrl.u32 %v108, 7
  %v110 = vsub.s32 0, %v109
  %v111 = vrot.slane %v27, %v110
  %v112 = vsub.f32 %v31, %v111
  %v113 = vsub.f32 %v36, %v111
  %v114 = vsub.f32 %v41, %v111
  %v115 = vsub.f32 %v46, %v111
  %v116 = vsub.f32 %v51, %v111
  %v117 = vsub.f32 %v56, %v111
  %v118 = vsub.f32 %v61, %v111
  %v119 = vsub.f32 %v66, %v111
  %v120 = vsub.f32 %v71, %v111
  %v121 = vsub.f32 %v76, %v111
  %v122 = vsub.f32 %v81, %v111
  %v123 = vsub.f32 %v86, %v111
  %v124 = vsub.f32 %v91, %v111
  %v125 = vsub.f32 %v96, %v111
  %v126 = vsub.f32 %v101, %v111
  %v127 = vsub.f32 %v106, %v111
  %v128 = vmul.f32 %v112, %v112
  %v129 = vmul.f32 %v113, %v113
  %v130 = vmul.f32 %v114, %v114
  %v131 = vmul.f32 %v115, %v115
  %v132 = vmul.f32 %v116, %v116
  %v133 = vmul.f32 %v117, %v117
  %v134 = vmul.f32 %v118, %v118
  %v135 = vmul.f32 %v119, %v119
  %v136 = vmul.f32 %v120, %v120
  %v137 = vmul.f32 %v121, %v121
  %v138 = vmul.f32 %v122, %v122
  %v139 = vmul.f32 %v123, %v123
  %v140 = vmul.f32 %v124, %v124
  %v141 = vmul.f32 %v125, %v125
  %v142 = vmul.f32 %v126, %v126
  %v143 = vmul.f32 %v127, %v127
  %v144 = vadd.f32 %v128, 0.0
  %v145 = vadd.f32 %v129, 0.0
  %v146 = vadd.f32 %v130, 0.0
  %v147 = vadd.f32 %v131, 0.0
  %v148 = vadd.f32 %v132, 0.0
  %v149 = vadd.f32 %v133, 0.0
  %v150 = vadd.f32 %v134, 0.0
  %v151 = vadd.f32 %v135, 0.0
  %v152 = vadd.f32 %v136, 0.0
  %v153 = vadd.f32 %v137, 0.0
  %v154 = vadd.f32 %v138, 0.0
  %v155 = vadd.f32 %v139, 0.0
  %v156 = vadd.f32 %v140, 0.0
  %v157 = vadd.f32 %v141, 0.0
  %v158 = vadd.f32 %v142, 0.0
  %v159 = vadd.f32 %v143, 0.0
  %160 = vset.pattern.permute.xlu0 1
  %161 = vperm.xlu0 %160, %v11
  %v162 = vpop.permute.xlu0 %161
  %164 = vset.pattern.permute.xlu0 1
  %165 = vperm.xlu0 %164, %v12
  %v166 = vpop.permute.xlu0 %165
  %168 = vset.pattern.permute.xlu0 1
  %169 = vperm.xlu0 %168, %v13
  %v170 = vpop.permute.xlu0 %169
  %172 = vset.pattern.permute.xlu0 1
  %173 = vperm.xlu0 %172, %v14
  %v174 = vpop.permute.xlu0 %173
  %176 = vset.pattern.permute.xlu0 1
  %177 = vperm.xlu0 %176, %v15
  %v178 = vpop.permute.xlu0 %177
  %180 = vset.pattern.permute.xlu0 1
  %181 = vperm.xlu0 %180, %v16
  %v182 = vpop.permute.xlu0 %181
  %184 = vset.pattern.permute.xlu0 1
  %185 = vperm.xlu0 %184, %v17
  %v186 = vpop.permute.xlu0 %185
  %188 = vset.pattern.permute.xlu0 1
  %189 = vperm.xlu0 %188, %v18
  %v190 = vpop.permute.xlu0 %189
  %192 = vset.pattern.permute.xlu0 1
  %193 = vperm.xlu0 %192, %v19
  %v194 = vpop.permute.xlu0 %193
  %196 = vset.pattern.permute.xlu0 1
  %197 = vperm.xlu0 %196, %v20
  %v198 = vpop.permute.xlu0 %197
  %200 = vset.pattern.permute.xlu0 1
  %201 = vperm.xlu0 %200, %v21
  %v202 = vpop.permute.xlu0 %201
  %204 = vset.pattern.permute.xlu0 1
  %205 = vperm.xlu0 %204, %v22
  %v206 = vpop.permute.xlu0 %205
  %208 = vset.pattern.permute.xlu0 1
  %209 = vperm.xlu0 %208, %v23
  %v210 = vpop.permute.xlu0 %209
  %212 = vset.pattern.permute.xlu0 1
  %213 = vperm.xlu0 %212, %v24
  %v214 = vpop.permute.xlu0 %213
  %216 = vset.pattern.permute.xlu0 1
  %217 = vperm.xlu0 %216, %v25
  %v218 = vpop.permute.xlu0 %217
  %220 = vset.pattern.permute.xlu0 1
  %221 = vperm.xlu0 %220, %v26
  %v222 = vpop.permute.xlu0 %221
  %v224 = vlaneseq
  %v225 = vshrl.u32 %v224, 7
  %v226 = vsub.s32 1, %v225
  %v227 = vrot.slane %v27, %v226
  %v228 = vsub.f32 %v162, %v227
  %v229 = vsub.f32 %v166, %v227
  %v230 = vsub.f32 %v170, %v227
  %v231 = vsub.f32 %v174, %v227
  %v232 = vsub.f32 %v178, %v227
  %v233 = vsub.f32 %v182, %v227
  %v234 = vsub.f32 %v186, %v227
  %v235 = vsub.f32 %v190, %v227
  %v236 = vsub.f32 %v194, %v227
  %v237 = vsub.f32 %v198, %v227
  %v238 = vsub.f32 %v202, %v227
  %v239 = vsub.f32 %v206, %v227
  %v240 = vsub.f32 %v210, %v227
  %v241 = vsub.f32 %v214, %v227
  %v242 = vsub.f32 %v218, %v227
  %v243 = vsub.f32 %v222, %v227
  %v244 = vmul.f32 %v228, %v228
  %v245 = vmul.f32 %v229, %v229
  %v246 = vmul.f32 %v230, %v230
  %v247 = vmul.f32 %v231, %v231
  %v248 = vmul.f32 %v232, %v232
  %v249 = vmul.f32 %v233, %v233
  %v250 = vmul.f32 %v234, %v234
  %v251 = vmul.f32 %v235, %v235
  %v252 = vmul.f32 %v236, %v236
  %v253 = vmul.f32 %v237, %v237
  %v254 = vmul.f32 %v238, %v238
  %v255 = vmul.f32 %v239, %v239
  %v256 = vmul.f32 %v240, %v240
  %v257 = vmul.f32 %v241, %v241
  %v258 = vmul.f32 %v242, %v242
  %v259 = vmul.f32 %v243, %v243
  %v260 = vadd.f32 %v144, %v244
  %v261 = vadd.f32 %v145, %v245
  %v262 = vadd.f32 %v146, %v246
  %v263 = vadd.f32 %v147, %v247
  %v264 = vadd.f32 %v148, %v248
  %v265 = vadd.f32 %v149, %v249
  %v266 = vadd.f32 %v150, %v250
  %v267 = vadd.f32 %v151, %v251
  %v268 = vadd.f32 %v152, %v252
  %v269 = vadd.f32 %v153, %v253
  %v270 = vadd.f32 %v154, %v254
  %v271 = vadd.f32 %v155, %v255
  %v272 = vadd.f32 %v156, %v256
  %v273 = vadd.f32 %v157, %v257
  %v274 = vadd.f32 %v158, %v258
  %v275 = vadd.f32 %v159, %v259
  %276 = vset.pattern.permute.xlu0 2
  %277 = vperm.xlu0 %276, %v11
  %v278 = vpop.permute.xlu0 %277
  %280 = vset.pattern.permute.xlu0 2
  %281 = vperm.xlu0 %280, %v12
  %v282 = vpop.permute.xlu0 %281
  %284 = vset.pattern.permute.xlu0 2
  %285 = vperm.xlu0 %284, %v13
  %v286 = vpop.permute.xlu0 %285
  %288 = vset.pattern.permute.xlu0 2
  %289 = vperm.xlu0 %288, %v14
  %v290 = vpop.permute.xlu0 %289
  %292 = vset.pattern.permute.xlu0 2
  %293 = vperm.xlu0 %292, %v15
  %v294 = vpop.permute.xlu0 %293
  %296 = vset.pattern.permute.xlu0 2
  %297 = vperm.xlu0 %296, %v16
  %v298 = vpop.permute.xlu0 %297
  %300 = vset.pattern.permute.xlu0 2
  %301 = vperm.xlu0 %300, %v17
  %v302 = vpop.permute.xlu0 %301
  %304 = vset.pattern.permute.xlu0 2
  %305 = vperm.xlu0 %304, %v18
  %v306 = vpop.permute.xlu0 %305
  %308 = vset.pattern.permute.xlu0 2
  %309 = vperm.xlu0 %308, %v19
  %v310 = vpop.permute.xlu0 %309
  %312 = vset.pattern.permute.xlu0 2
  %313 = vperm.xlu0 %312, %v20
  %v314 = vpop.permute.xlu0 %313
  %316 = vset.pattern.permute.xlu0 2
  %317 = vperm.xlu0 %316, %v21
  %v318 = vpop.permute.xlu0 %317
  %320 = vset.pattern.permute.xlu0 2
  %321 = vperm.xlu0 %320, %v22
  %v322 = vpop.permute.xlu0 %321
  %324 = vset.pattern.permute.xlu0 2
  %325 = vperm.xlu0 %324, %v23
  %v326 = vpop.permute.xlu0 %325
  %328 = vset.pattern.permute.xlu0 2
  %329 = vperm.xlu0 %328, %v24
  %v330 = vpop.permute.xlu0 %329
  %332 = vset.pattern.permute.xlu0 2
  %333 = vperm.xlu0 %332, %v25
  %v334 = vpop.permute.xlu0 %333
  %336 = vset.pattern.permute.xlu0 2
  %337 = vperm.xlu0 %336, %v26
  %v338 = vpop.permute.xlu0 %337
  %v340 = vlaneseq
  %v341 = vshrl.u32 %v340, 7
  %v342 = vsub.s32 2, %v341
  %v343 = vrot.slane %v27, %v342
  %v344 = vsub.f32 %v278, %v343
  %v345 = vsub.f32 %v282, %v343
  %v346 = vsub.f32 %v286, %v343
  %v347 = vsub.f32 %v290, %v343
  %v348 = vsub.f32 %v294, %v343
  %v349 = vsub.f32 %v298, %v343
  %v350 = vsub.f32 %v302, %v343
  %v351 = vsub.f32 %v306, %v343
  %v352 = vsub.f32 %v310, %v343
  %v353 = vsub.f32 %v314, %v343
  %v354 = vsub.f32 %v318, %v343
  %v355 = vsub.f32 %v322, %v343
  %v356 = vsub.f32 %v326, %v343
  %v357 = vsub.f32 %v330, %v343
  %v358 = vsub.f32 %v334, %v343
  %v359 = vsub.f32 %v338, %v343
  %v360 = vmul.f32 %v344, %v344
  %v361 = vmul.f32 %v345, %v345
  %v362 = vmul.f32 %v346, %v346
  %v363 = vmul.f32 %v347, %v347
  %v364 = vmul.f32 %v348, %v348
  %v365 = vmul.f32 %v349, %v349
  %v366 = vmul.f32 %v350, %v350
  %v367 = vmul.f32 %v351, %v351
  %v368 = vmul.f32 %v352, %v352
  %v369 = vmul.f32 %v353, %v353
  %v370 = vmul.f32 %v354, %v354
  %v371 = vmul.f32 %v355, %v355
  %v372 = vmul.f32 %v356, %v356
  %v373 = vmul.f32 %v357, %v357
  %v374 = vmul.f32 %v358, %v358
  %v375 = vmul.f32 %v359, %v359
  %v376 = vadd.f32 %v260, %v360
  %v377 = vadd.f32 %v261, %v361
  %v378 = vadd.f32 %v262, %v362
  %v379 = vadd.f32 %v263, %v363
  %v380 = vadd.f32 %v264, %v364
  %v381 = vadd.f32 %v265, %v365
  %v382 = vadd.f32 %v266, %v366
  %v383 = vadd.f32 %v267, %v367
  %v384 = vadd.f32 %v268, %v368
  %v385 = vadd.f32 %v269, %v369
  %v386 = vadd.f32 %v270, %v370
  %v387 = vadd.f32 %v271, %v371
  %v388 = vadd.f32 %v272, %v372
  %v389 = vadd.f32 %v273, %v373
  %v390 = vadd.f32 %v274, %v374
  %v391 = vadd.f32 %v275, %v375
  %392 = vset.pattern.permute.xlu0 3
  %393 = vperm.xlu0 %392, %v11
  %v394 = vpop.permute.xlu0 %393
  %396 = vset.pattern.permute.xlu0 3
  %397 = vperm.xlu0 %396, %v12
  %v398 = vpop.permute.xlu0 %397
  %400 = vset.pattern.permute.xlu0 3
  %401 = vperm.xlu0 %400, %v13
  %v402 = vpop.permute.xlu0 %401
  %404 = vset.pattern.permute.xlu0 3
  %405 = vperm.xlu0 %404, %v14
  %v406 = vpop.permute.xlu0 %405
  %408 = vset.pattern.permute.xlu0 3
  %409 = vperm.xlu0 %408, %v15
  %v410 = vpop.permute.xlu0 %409
  %412 = vset.pattern.permute.xlu0 3
  %413 = vperm.xlu0 %412, %v16
  %v414 = vpop.permute.xlu0 %413
  %416 = vset.pattern.permute.xlu0 3
  %417 = vperm.xlu0 %416, %v17
  %v418 = vpop.permute.xlu0 %417
  %420 = vset.pattern.permute.xlu0 3
  %421 = vperm.xlu0 %420, %v18
  %v422 = vpop.permute.xlu0 %421
  %424 = vset.pattern.permute.xlu0 3
  %425 = vperm.xlu0 %424, %v19
  %v426 = vpop.permute.xlu0 %425
  %428 = vset.pattern.permute.xlu0 3
  %429 = vperm.xlu0 %428, %v20
  %v430 = vpop.permute.xlu0 %429
  %432 = vset.pattern.permute.xlu0 3
  %433 = vperm.xlu0 %432, %v21
  %v434 = vpop.permute.xlu0 %433
  %436 = vset.pattern.permute.xlu0 3
  %437 = vperm.xlu0 %436, %v22
  %v438 = vpop.permute.xlu0 %437
  %440 = vset.pattern.permute.xlu0 3
  %441 = vperm.xlu0 %440, %v23
  %v442 = vpop.permute.xlu0 %441
  %444 = vset.pattern.permute.xlu0 3
  %445 = vperm.xlu0 %444, %v24
  %v446 = vpop.permute.xlu0 %445
  %448 = vset.pattern.permute.xlu0 3
  %449 = vperm.xlu0 %448, %v25
  %v450 = vpop.permute.xlu0 %449
  %452 = vset.pattern.permute.xlu0 3
  %453 = vperm.xlu0 %452, %v26
  %v454 = vpop.permute.xlu0 %453
  %v456 = vlaneseq
  %v457 = vshrl.u32 %v456, 7
  %v458 = vsub.s32 3, %v457
  %v459 = vrot.slane %v27, %v458
  %v460 = vsub.f32 %v394, %v459
  %v461 = vsub.f32 %v398, %v459
  %v462 = vsub.f32 %v402, %v459
  %v463 = vsub.f32 %v406, %v459
  %v464 = vsub.f32 %v410, %v459
  %v465 = vsub.f32 %v414, %v459
  %v466 = vsub.f32 %v418, %v459
  %v467 = vsub.f32 %v422, %v459
  %v468 = vsub.f32 %v426, %v459
  %v469 = vsub.f32 %v430, %v459
  %v470 = vsub.f32 %v434, %v459
  %v471 = vsub.f32 %v438, %v459
  %v472 = vsub.f32 %v442, %v459
  %v473 = vsub.f32 %v446, %v459
  %v474 = vsub.f32 %v450, %v459
  %v475 = vsub.f32 %v454, %v459
  %v476 = vmul.f32 %v460, %v460
  %v477 = vmul.f32 %v461, %v461
  %v478 = vmul.f32 %v462, %v462
  %v479 = vmul.f32 %v463, %v463
  %v480 = vmul.f32 %v464, %v464
  %v481 = vmul.f32 %v465, %v465
  %v482 = vmul.f32 %v466, %v466
  %v483 = vmul.f32 %v467, %v467
  %v484 = vmul.f32 %v468, %v468
  %v485 = vmul.f32 %v469, %v469
  %v486 = vmul.f32 %v470, %v470
  %v487 = vmul.f32 %v471, %v471
  %v488 = vmul.f32 %v472, %v472
  %v489 = vmul.f32 %v473, %v473
  %v490 = vmul.f32 %v474, %v474
  %v491 = vmul.f32 %v475, %v475
  %v492 = vadd.f32 %v376, %v476
  %v493 = vadd.f32 %v377, %v477
  %v494 = vadd.f32 %v378, %v478
  %v495 = vadd.f32 %v379, %v479
  %v496 = vadd.f32 %v380, %v480
  %v497 = vadd.f32 %v381, %v481
  %v498 = vadd.f32 %v382, %v482
  %v499 = vadd.f32 %v383, %v483
  %v500 = vadd.f32 %v384, %v484
  %v501 = vadd.f32 %v385, %v485
  %v502 = vadd.f32 %v386, %v486
  %v503 = vadd.f32 %v387, %v487
  %v504 = vadd.f32 %v388, %v488
  %v505 = vadd.f32 %v389, %v489
  %v506 = vadd.f32 %v390, %v490
  %v507 = vadd.f32 %v391, %v491
  %vm508 = vcmask 64512
  %509 = vst.msk [vmem:[%s2] sm:$0xff] %vm508, %v492
  %510 = vst.msk [vmem:[%s2 + $0x8] sm:$0xff] %vm508, %v493
  %511 = vst.msk [vmem:[%s2 + $0x10] sm:$0xff] %vm508, %v494
  %512 = vst.msk [vmem:[%s2 + $0x18] sm:$0xff] %vm508, %v495
  %513 = vst.msk [vmem:[%s2 + $0x20] sm:$0xff] %vm508, %v496
  %514 = vst.msk [vmem:[%s2 + $0x28] sm:$0xff] %vm508, %v497
  %515 = vst.msk [vmem:[%s2 + $0x30] sm:$0xff] %vm508, %v498
  %516 = vst.msk [vmem:[%s2 + $0x38] sm:$0xff] %vm508, %v499
  %517 = vst.msk [vmem:[%s2 + $0x40] sm:$0xff] %vm508, %v500
  %518 = vst.msk [vmem:[%s2 + $0x48] sm:$0xff] %vm508, %v501
  %519 = vst.msk [vmem:[%s2 + $0x50] sm:$0xff] %vm508, %v502
  %520 = vst.msk [vmem:[%s2 + $0x58] sm:$0xff] %vm508, %v503
  %521 = vst.msk [vmem:[%s2 + $0x60] sm:$0xff] %vm508, %v504
  %522 = vst.msk [vmem:[%s2 + $0x68] sm:$0xff] %vm508, %v505
  %523 = vst.msk [vmem:[%s2 + $0x70] sm:$0xff] %vm508, %v506
  %524 = vst.msk [vmem:[%s2 + $0x78] sm:$0xff] %vm508, %v507
  // Predicated region
  $region10: #{gmdtw2.2} parent=0 // pred_check
    _
  $region11: #{gmdtw2.2} parent=0 // pred_check_branch
    %526 = sbr.rel (0) target = $region13
  $region12: #{gmdtw2.2} parent=0 // pred_region
    _
  $region13: #{gmdtw2.2} parent=0 // pred_fallthru
    _
  // Predicated region
  $region14: #{gmdtw2.2} parent=0 // pred_check
    _
  $region15: #{gmdtw2.2} parent=0 // pred_check_branch
    %528 = sbr.rel (0) target = $region17
  $region16: #{gmdtw2.2} parent=0 // pred_region
    _
  $region17: #{gmdtw2.2} parent=0 // pred_fallthru
    _

// kernel: gmdtw2.3
$region0: #{gmdtw2.3}
  #allocation0 [shape = 'u32[]', space=smem, size = 0x4, offset = 0x4, fixed_abs, tag = 'smem constant byte address 0x4 - core index']
  #allocation1 [shape = 'u32[144,128]{1,0:T(1,128)}', space=vmem, size = 0x12000, scoped, tag = 'internal scratch']
  %s0 = inlined_call_operand.vmem [shape: f32[16,128], index: 0, kind: input, shape index: {}]
  %s1 = inlined_call_operand.vmem [shape: f32[1,128], index: 1, kind: output, shape index: {}]
  %s2 = sld [smem:[#allocation0]]
  $region21: #{gmdtw2.3} parent=0
    _
  %s4 = ssub.s32 1, %s2
  %s5 = scalar_select 0, %s4, %s2
  // Predicated region
  $region2: #{gmdtw2.3} parent=0 // pred_check
    _
  $region3: #{gmdtw2.3} parent=0 // pred_check_branch
    %7 = sbr.rel (0) target = $region5
  $region4: #{gmdtw2.3} parent=0 // pred_region
    _
  $region5: #{gmdtw2.3} parent=0 // pred_fallthru
    _
  %v8 = vlaneseq
  %v9 = vand.u32 %v8, 127
  %vm10 = vcmp.eq.s32.totalorder %v9, 0
  %vm11 = vcmp.lt.s32.totalorder %v9, 8
  loop: start=0, step=1, limit=2
  $region6: #{gmdtw2.3} parent=0 // loop_pre_header
    _
  $region7: #{gmdtw2.3} parent=0 // loop_header
    %s13 = sphi 0, %s17
    %p14 = scmp.ge.s32.totalorder %s13, 2
    %v18 = vphi -1e+30, %v275
    %v19 = vphi -1e+30, %v240
    %v20 = vphi -1e+30, %v245
  $region8: #{gmdtw2.3} parent=0 // loop_header_branch
    %16 = sbr.rel (%p14) target = $region12
  $region9: #{gmdtw2.3} parent=0 // loop_body
    %s21 = smul.u32 %s13, 8
    %s22 = scalar_lea.vmem %s0, %s21
    %v23 = vld [vmem:[%s22] sm:$0xff]
    %24 = vrot.lane.b32.xlu0 %v18, 1
    %v25 = vpop.permute.xlu0 %24
    %v26 = vsel %vm10, -1e+30, %v25
    %27 = vrot.lane.b32.xlu0 %v19, 1
    %v28 = vpop.permute.xlu0 %27
    %v29 = vsel %vm10, -1e+30, %v28
    %p30 = scmp.eq.s32.totalorder %s13, 0
    %s31 = scalar_select %p30, 1, 0
    %v32 = vstv %s31
    %vm33 = vcmp.eq.s32.totalorder %v32, 1
    %vm34 = vmand %vm10, %vm33
    %v35 = vsel %vm34, 0.0, %v29
    %v36 = vmax.f32 %v18, %v26
    %v37 = vmax.f32 %v36, %v35
    %v38 = vsub.f32 %v18, %v37
    %v39 = vmul.f32 %v38, 1.442695
    %v40 = vpow.pop %v39
    %v41 = vsub.f32 %v26, %v37
    %v42 = vmul.f32 %v41, 1.442695
    %v43 = vpow.pop %v42
    %v44 = vadd.f32 %v40, %v43
    %v45 = vsub.f32 %v35, %v37
    %v46 = vmul.f32 %v45, 1.442695
    %v47 = vpow.pop %v46
    %v48 = vadd.f32 %v44, %v47
    %v49 = vlog2.pop %v48
    %v50 = vmul.f32 %v49, 0.6931472
    %v51 = vadd.f32 %v50, %v37
    %v52 = vsub.f32 %v51, %v23
    %v53 = vstv %s21
    %v54 = vsub.s32 %v53, %v9
    %vm55 = vcmp.ge.s32.totalorder %v54, 0
    %vm56 = vcmp.lt.s32.totalorder %v54, 8
    %vm57 = vmand %vm55, %vm56
    %vm58 = vmand %vm57, %vm11
    %v59 = vsel %vm58, %v52, -1e+30
    %s60 = sadd.s32 %s21, 1
    %61 = vrot.lane.b32.xlu0 %v59, 1
    %v62 = vpop.permute.xlu0 %61
    %v63 = vsel %vm10, -1e+30, %v62
    %v64 = vmax.f32 %v59, %v63
    %v65 = vmax.f32 %v64, %v26
    %v66 = vsub.f32 %v59, %v65
    %v67 = vmul.f32 %v66, 1.442695
    %v68 = vpow.pop %v67
    %v69 = vsub.f32 %v63, %v65
    %v70 = vmul.f32 %v69, 1.442695
    %v71 = vpow.pop %v70
    %v72 = vadd.f32 %v68, %v71
    %v73 = vsub.f32 %v26, %v65
    %v74 = vmul.f32 %v73, 1.442695
    %v75 = vpow.pop %v74
    %v76 = vadd.f32 %v72, %v75
    %v77 = vlog2.pop %v76
    %v78 = vmul.f32 %v77, 0.6931472
    %v79 = vadd.f32 %v78, %v65
    %v81 = vrot.slane %v23, 1
    %v83 = vsub.f32 %v79, %v81
    %v84 = vstv %s60
    %v85 = vsub.s32 %v84, %v9
    %vm86 = vcmp.ge.s32.totalorder %v85, 0
    %vm87 = vcmp.lt.s32.totalorder %v85, 8
    %vm88 = vmand %vm86, %vm87
    %vm89 = vmand %vm88, %vm11
    %v90 = vsel %vm89, %v83, -1e+30
    %s91 = sadd.s32 %s21, 2
    %92 = vrot.lane.b32.xlu0 %v90, 1
    %v93 = vpop.permute.xlu0 %92
    %v94 = vsel %vm10, -1e+30, %v93
    %v95 = vmax.f32 %v90, %v94
    %v96 = vmax.f32 %v95, %v63
    %v97 = vsub.f32 %v90, %v96
    %v98 = vmul.f32 %v97, 1.442695
    %v99 = vpow.pop %v98
    %v100 = vsub.f32 %v94, %v96
    %v101 = vmul.f32 %v100, 1.442695
    %v102 = vpow.pop %v101
    %v103 = vadd.f32 %v99, %v102
    %v104 = vsub.f32 %v63, %v96
    %v105 = vmul.f32 %v104, 1.442695
    %v106 = vpow.pop %v105
    %v107 = vadd.f32 %v103, %v106
    %v108 = vlog2.pop %v107
    %v109 = vmul.f32 %v108, 0.6931472
    %v110 = vadd.f32 %v109, %v96
    %v111 = vrot.slane %v23, 2
    %v113 = vsub.f32 %v110, %v111
    %v114 = vstv %s91
    %v115 = vsub.s32 %v114, %v9
    %vm116 = vcmp.ge.s32.totalorder %v115, 0
    %vm117 = vcmp.lt.s32.totalorder %v115, 8
    %vm118 = vmand %vm116, %vm117
    %vm119 = vmand %vm118, %vm11
    %v120 = vsel %vm119, %v113, -1e+30
    %s121 = sadd.s32 %s21, 3
    %122 = vrot.lane.b32.xlu0 %v120, 1
    %v123 = vpop.permute.xlu0 %122
    %v124 = vsel %vm10, -1e+30, %v123
    %v125 = vmax.f32 %v120, %v124
    %v126 = vmax.f32 %v125, %v94
    %v127 = vsub.f32 %v120, %v126
    %v128 = vmul.f32 %v127, 1.442695
    %v129 = vpow.pop %v128
    %v130 = vsub.f32 %v124, %v126
    %v131 = vmul.f32 %v130, 1.442695
    %v132 = vpow.pop %v131
    %v133 = vadd.f32 %v129, %v132
    %v134 = vsub.f32 %v94, %v126
    %v135 = vmul.f32 %v134, 1.442695
    %v136 = vpow.pop %v135
    %v137 = vadd.f32 %v133, %v136
    %v138 = vlog2.pop %v137
    %v139 = vmul.f32 %v138, 0.6931472
    %v140 = vadd.f32 %v139, %v126
    %v141 = vrot.slane %v23, 3
    %v143 = vsub.f32 %v140, %v141
    %v144 = vstv %s121
    %v145 = vsub.s32 %v144, %v9
    %vm146 = vcmp.ge.s32.totalorder %v145, 0
    %vm147 = vcmp.lt.s32.totalorder %v145, 8
    %vm148 = vmand %vm146, %vm147
    %vm149 = vmand %vm148, %vm11
    %v150 = vsel %vm149, %v143, -1e+30
    %s151 = sadd.s32 %s21, 4
    %152 = vrot.lane.b32.xlu0 %v150, 1
    %v153 = vpop.permute.xlu0 %152
    %v154 = vsel %vm10, -1e+30, %v153
    %v155 = vmax.f32 %v150, %v154
    %v156 = vmax.f32 %v155, %v124
    %v157 = vsub.f32 %v150, %v156
    %v158 = vmul.f32 %v157, 1.442695
    %v159 = vpow.pop %v158
    %v160 = vsub.f32 %v154, %v156
    %v161 = vmul.f32 %v160, 1.442695
    %v162 = vpow.pop %v161
    %v163 = vadd.f32 %v159, %v162
    %v164 = vsub.f32 %v124, %v156
    %v165 = vmul.f32 %v164, 1.442695
    %v166 = vpow.pop %v165
    %v167 = vadd.f32 %v163, %v166
    %v168 = vlog2.pop %v167
    %v169 = vmul.f32 %v168, 0.6931472
    %v170 = vadd.f32 %v169, %v156
    %v171 = vrot.slane %v23, 4
    %v173 = vsub.f32 %v170, %v171
    %v174 = vstv %s151
    %v175 = vsub.s32 %v174, %v9
    %vm176 = vcmp.ge.s32.totalorder %v175, 0
    %vm177 = vcmp.lt.s32.totalorder %v175, 8
    %vm178 = vmand %vm176, %vm177
    %vm179 = vmand %vm178, %vm11
    %v180 = vsel %vm179, %v173, -1e+30
    %s181 = sadd.s32 %s21, 5
    %182 = vrot.lane.b32.xlu0 %v180, 1
    %v183 = vpop.permute.xlu0 %182
    %v184 = vsel %vm10, -1e+30, %v183
    %v185 = vmax.f32 %v180, %v184
    %v186 = vmax.f32 %v185, %v154
    %v187 = vsub.f32 %v180, %v186
    %v188 = vmul.f32 %v187, 1.442695
    %v189 = vpow.pop %v188
    %v190 = vsub.f32 %v184, %v186
    %v191 = vmul.f32 %v190, 1.442695
    %v192 = vpow.pop %v191
    %v193 = vadd.f32 %v189, %v192
    %v194 = vsub.f32 %v154, %v186
    %v195 = vmul.f32 %v194, 1.442695
    %v196 = vpow.pop %v195
    %v197 = vadd.f32 %v193, %v196
    %v198 = vlog2.pop %v197
    %v199 = vmul.f32 %v198, 0.6931472
    %v200 = vadd.f32 %v199, %v186
    %v201 = vrot.slane %v23, 5
    %v203 = vsub.f32 %v200, %v201
    %v204 = vstv %s181
    %v205 = vsub.s32 %v204, %v9
    %vm206 = vcmp.ge.s32.totalorder %v205, 0
    %vm207 = vcmp.lt.s32.totalorder %v205, 8
    %vm208 = vmand %vm206, %vm207
    %vm209 = vmand %vm208, %vm11
    %v210 = vsel %vm209, %v203, -1e+30
    %s211 = sadd.s32 %s21, 6
    %212 = vrot.lane.b32.xlu0 %v210, 1
    %v213 = vpop.permute.xlu0 %212
    %v214 = vsel %vm10, -1e+30, %v213
    %v215 = vmax.f32 %v210, %v214
    %v216 = vmax.f32 %v215, %v184
    %v217 = vsub.f32 %v210, %v216
    %v218 = vmul.f32 %v217, 1.442695
    %v219 = vpow.pop %v218
    %v220 = vsub.f32 %v214, %v216
    %v221 = vmul.f32 %v220, 1.442695
    %v222 = vpow.pop %v221
    %v223 = vadd.f32 %v219, %v222
    %v224 = vsub.f32 %v184, %v216
    %v225 = vmul.f32 %v224, 1.442695
    %v226 = vpow.pop %v225
    %v227 = vadd.f32 %v223, %v226
    %v228 = vlog2.pop %v227
    %v229 = vmul.f32 %v228, 0.6931472
    %v230 = vadd.f32 %v229, %v216
    %v231 = vrot.slane %v23, 6
    %v233 = vsub.f32 %v230, %v231
    %v234 = vstv %s211
    %v235 = vsub.s32 %v234, %v9
    %vm236 = vcmp.ge.s32.totalorder %v235, 0
    %vm237 = vcmp.lt.s32.totalorder %v235, 8
    %vm238 = vmand %vm236, %vm237
    %vm239 = vmand %vm238, %vm11
    %v240 = vsel %vm239, %v233, -1e+30
    %p241 = scmp.eq.s32.totalorder %s13, 1
    %s242 = scalar_select %p241, 1, 0
    %v243 = vstv %s242
    %vm244 = vcmp.eq.s32.totalorder %v243, 1
    %v245 = vsel %vm244, %v240, %v20
    %s246 = sadd.s32 %s21, 7
    %247 = vrot.lane.b32.xlu0 %v240, 1
    %v248 = vpop.permute.xlu0 %247
    %v249 = vsel %vm10, -1e+30, %v248
    %v250 = vmax.f32 %v240, %v249
    %v251 = vmax.f32 %v250, %v214
    %v252 = vsub.f32 %v240, %v251
    %v253 = vmul.f32 %v252, 1.442695
    %v254 = vpow.pop %v253
    %v255 = vsub.f32 %v249, %v251
    %v256 = vmul.f32 %v255, 1.442695
    %v257 = vpow.pop %v256
    %v258 = vadd.f32 %v254, %v257
    %v259 = vsub.f32 %v214, %v251
    %v260 = vmul.f32 %v259, 1.442695
    %v261 = vpow.pop %v260
    %v262 = vadd.f32 %v258, %v261
    %v263 = vlog2.pop %v262
    %v264 = vmul.f32 %v263, 0.6931472
    %v265 = vadd.f32 %v264, %v251
    %v266 = vrot.slane %v23, 7
    %v268 = vsub.f32 %v265, %v266
    %v269 = vstv %s246
    %v270 = vsub.s32 %v269, %v9
    %vm271 = vcmp.ge.s32.totalorder %v270, 0
    %vm272 = vcmp.lt.s32.totalorder %v270, 8
    %vm273 = vmand %vm271, %vm272
    %vm274 = vmand %vm273, %vm11
    %v275 = vsel %vm274, %v268, -1e+30
  $region10: #{gmdtw2.3} parent=0 // loop_footer
    %s17 = sadd.s32 1, %s13
  $region11: #{gmdtw2.3} parent=0 // loop_footer_branch
    %12 = sbr.rel target = $region7
  $region12: #{gmdtw2.3} parent=0 // loop_exit
    _
  %276 = vst [vmem:[%s1] sm:$0x1] %v20
  // Predicated region
  $region13: #{gmdtw2.3} parent=0 // pred_check
    _
  $region14: #{gmdtw2.3} parent=0 // pred_check_branch
    %278 = sbr.rel (0) target = $region16
  $region15: #{gmdtw2.3} parent=0 // pred_region
    _
  $region16: #{gmdtw2.3} parent=0 // pred_fallthru
    _
  // Predicated region
  $region17: #{gmdtw2.3} parent=0 // pred_check
    _
  $region18: #{gmdtw2.3} parent=0 // pred_check_branch
    %280 = sbr.rel (0) target = $region20
  $region19: #{gmdtw2.3} parent=0 // pred_region
    _
  $region20: #{gmdtw2.3} parent=0 // pred_fallthru
    _

</llo_original>
